<compile_context>
chip_gen: v7x
topology: tpu7x:2x2x1
jax: 0.10.0
libtpu: 0.0.40
codegen_flags: <defaults>
</compile_context>

<pallas_src>
import jax
import jax.numpy as jnp
import numpy as np
from jax.experimental import pallas as pl
from jax.experimental.pallas import tpu as pltpu

_LANES = 128
_SUBLANES = 8
_NUM_CORE_SPLITS = 2      # leading parallel grid axis (2 TCs on v7x; harmless elsewhere)
_MAX_BLOCK_ROWS = 1024    # (1024, 128) f32 block = 512 KiB -> ~2 MiB double-buffered/stream


def _rec_sum_kernel(gt_ref, pred_ref, out_ref, acc_ref):
    """Accumulate sum((pred - gt)^2); emit one (8,128) partial-sum tile per core."""
    @pl.when(pl.program_id(1) == 0)
    def _init():
        acc_ref[...] = jnp.zeros_like(acc_ref)

    d = pred_ref[...].astype(jnp.float32) - gt_ref[...].astype(jnp.float32)
    acc_ref[...] += d * d  # pure VPU work per grid step

    @pl.when(pl.program_id(1) == pl.num_programs(1) - 1)
    def _finalize():
        acc = acc_ref[...]
        out_ref[0, :, :] = jnp.sum(acc.reshape(-1, _SUBLANES, _LANES), axis=0)


def _kl_sum_kernel(mu_ref, scale_ref, out_ref, acc_ref):
    """Accumulate sum(KL(N(mu,s) || N(0,1))); emit one (8,128) partial-sum tile per core."""
    @pl.when(pl.program_id(1) == 0)
    def _init():
        acc_ref[...] = jnp.zeros_like(acc_ref)

    m = mu_ref[...].astype(jnp.float32)
    s = scale_ref[...].astype(jnp.float32)
    # KL(N(m, s) || N(0, 1)) = -log(s) + (s^2 + m^2 - 1) / 2  (elementwise)
    acc_ref[...] += 0.5 * (s * s + m * m - 1.0) - jnp.log(s)

    @pl.when(pl.program_id(1) == pl.num_programs(1) - 1)
    def _finalize():
        acc = acc_ref[...]
        out_ref[0, :, :] = jnp.sum(acc.reshape(-1, _SUBLANES, _LANES), axis=0)


def _round_up(x, m):
    return ((x + m - 1) // m) * m


def _choose_block_rows(n_elems, num_splits):
    rows = -(-n_elems // _LANES)
    rows_per_split = -(-rows // num_splits)
    return min(_MAX_BLOCK_ROWS, _round_up(rows_per_split, _SUBLANES))


def _flatten_pad_tile(x, pad_value, block_rows, num_splits):
    """Flatten to 1D, pad with a neutral value, reshape to lane-dense [rows, 128]."""
    flat = x.reshape(-1)
    n = flat.shape[0]
    chunk = block_rows * _LANES * num_splits
    total = _round_up(max(n, 1), chunk)
    if total != n:
        flat = jnp.concatenate(
            [flat, jnp.full((total - n,), pad_value, dtype=flat.dtype)])
    return flat.reshape(total // _LANES, _LANES)


def _tiled_partial_sum(kernel_body, arrays, pad_values):
    """Run a tiled, accumulating reduction kernel over same-sized input streams."""
    n_elems = int(arrays[0].size)
    num_splits = _NUM_CORE_SPLITS
    block_rows = _choose_block_rows(n_elems, num_splits)
    tiled = [_flatten_pad_tile(a, pv, block_rows, num_splits)
             for a, pv in zip(arrays, pad_values)]
    rows_total = tiled[0].shape[0]
    blocks_per_split = rows_total // (block_rows * num_splits)

    in_spec = pl.BlockSpec(
        (block_rows, _LANES),
        lambda c, i, _n=blocks_per_split: (c * _n + i, 0))
    out_spec = pl.BlockSpec((1, _SUBLANES, _LANES), lambda c, i: (c, 0, 0))

    partial = pl.pallas_call(
        kernel_body,
        out_shape=jax.ShapeDtypeStruct(
            (num_splits, _SUBLANES, _LANES), jnp.float32),
        grid=(num_splits, blocks_per_split),
        in_specs=[in_spec] * len(tiled),
        out_specs=out_spec,
        scratch_shapes=[pltpu.VMEM((block_rows, _LANES), jnp.float32)],
        compiler_params=pltpu.CompilerParams(
            dimension_semantics=("parallel", "arbitrary")),
    )(*tiled)
    # Tiny (num_splits * 8 * 128) final reduce done in the wrapper.
    return jnp.sum(partial)


def _vae_loss_impl(gt_emotion, pred_emotion, mus, scales, kl_p):
    rec_loss = _tiled_partial_sum(
        _rec_sum_kernel, [gt_emotion, pred_emotion], [0.0, 0.0])
    kl_sum = _tiled_partial_sum(
        _kl_sum_kernel, [mus, scales], [0.0, 1.0])  # pad scale with 1.0 -> KL term 0
    # per-t mean, averaged over t == global mean over all T*B*D elements
    kld_loss = kl_sum / jnp.float32(mus.size)
    loss = rec_loss + jnp.asarray(kl_p, jnp.float32) * kld_loss
    return loss, rec_loss, kld_loss


_vae_loss_jit = jax.jit(_vae_loss_impl)


def vae_loss(gt_emotion, pred_emotion, mus, scales, kl_p=0.0002):
    """gt_emotion/pred_emotion: [B, S, C]; mus/scales: [T, B, D] (T Normal distributions)."""
    return _vae_loss_jit(gt_emotion, pred_emotion, mus, scales, jnp.float32(kl_p))


def _reference(gt, pred, mus, scales, kl_p=0.0002):
    gt = gt.astype(jnp.float32)
    pred = pred.astype(jnp.float32)
    mus = mus.astype(jnp.float32)
    scales = scales.astype(jnp.float32)
    rec = jnp.sum((pred - gt) ** 2)
    kl = -jnp.log(scales) + 0.5 * (scales ** 2 + mus ** 2 - 1.0)
    kld = jnp.mean(jnp.mean(kl.reshape(kl.shape[0], -1), axis=-1))
    return rec + kl_p * kld, rec, kld


if __name__ == "__main__":
    key = jax.random.PRNGKey(0)
    k1, k2, k3, k4 = jax.random.split(key, 4)

    B, S, C = 2, 8, 32       # emotion sequence: batch=2, seq=8, features=32
    T, D = 4, 32             # 4 Normal distributions over latent dim 32

    gt_emotion = jax.random.normal(k1, (B, S, C), dtype=jnp.float32)
    pred_emotion = jax.random.normal(k2, (B, S, C), dtype=jnp.float32)
    mus = jax.random.normal(k3, (T, B, D), dtype=jnp.float32) * 0.5
    scales = jnp.exp(0.3 * jax.random.normal(k4, (T, B, D), dtype=jnp.float32))

    loss, rec, kld = vae_loss(gt_emotion, pred_emotion, mus, scales, kl_p=0.0002)
    jax.block_until_ready((loss, rec, kld))

    loss_r, rec_r, kld_r = _reference(gt_emotion, pred_emotion, mus, scales, kl_p=0.0002)
    np.testing.assert_allclose(np.asarray(loss), np.asarray(loss_r), rtol=1e-5, atol=1e-5)
    np.testing.assert_allclose(np.asarray(rec), np.asarray(rec_r), rtol=1e-5, atol=1e-5)
    np.testing.assert_allclose(np.asarray(kld), np.asarray(kld_r), rtol=1e-5, atol=1e-5)

    print("KERNEL_OK")
</pallas_src>

<mosaic_0001>
module attributes {stable_mosaic.version = 11 : i64} {
  func.func @_rec_sum_kernel(%arg0: i32, %arg1: i32, %arg2: memref<8x128xf32, #tpu.memory_space<vmem>>, %arg3: memref<8x128xf32, #tpu.memory_space<vmem>>, %arg4: memref<1x8x128xf32, #tpu.memory_space<vmem>>, %arg5: memref<8x128xf32, #tpu.memory_space<vmem>>) attributes {dimension_semantics = [#tpu.dimension_semantics<parallel>, #tpu.dimension_semantics<arbitrary>], iteration_bounds = array<i64: 2, 1>, scalar_prefetch = 0 : i64, scratch_operands = 1 : i64, tpu.core_type = #tpu.core_type<tc>, window_params = [{transform_indices = @transform_0, window_bounds = array<i64: 8, 128>}, {transform_indices = @transform_1, window_bounds = array<i64: 8, 128>}, {transform_indices = @transform_2, window_bounds = array<i64: 1, 8, 128>}]} {
    %c0_i32 = arith.constant 0 : i32
    %0 = arith.cmpi eq, %arg1, %c0_i32 : i32
    %1 = arith.extui %0 : i1 to i32
    %c0_i32_0 = arith.constant 0 : i32
    %2 = arith.cmpi ne, %1, %c0_i32_0 : i32
    scf.if %2 {
      %cst = arith.constant 0.000000e+00 : f32
      %13 = vector.broadcast %cst : f32 to vector<8x128xf32>
      %c0_10 = arith.constant 0 : index
      %c0_11 = arith.constant 0 : index
      %14 = vector.load %arg5[%c0_10, %c0_11] : memref<8x128xf32, #tpu.memory_space<vmem>>, vector<8x128xf32>
      tpu.vector_store %arg5[%c0_10, %c0_11], %13 {strides = array<i32>} : memref<8x128xf32, #tpu.memory_space<vmem>>, vector<8x128xf32>,
    } else {
    }
    %c0 = arith.constant 0 : index
    %c0_1 = arith.constant 0 : index
    %3 = vector.load %arg3[%c0, %c0_1] : memref<8x128xf32, #tpu.memory_space<vmem>>, vector<8x128xf32>
    %c0_2 = arith.constant 0 : index
    %c0_3 = arith.constant 0 : index
    %4 = vector.load %arg2[%c0_2, %c0_3] : memref<8x128xf32, #tpu.memory_space<vmem>>, vector<8x128xf32>
    %5 = arith.subf %3, %4 : vector<8x128xf32>
    %c0_4 = arith.constant 0 : index
    %c0_5 = arith.constant 0 : index
    %6 = vector.load %arg5[%c0_4, %c0_5] : memref<8x128xf32, #tpu.memory_space<vmem>>, vector<8x128xf32>
    %7 = arith.mulf %5, %5 : vector<8x128xf32>
    %8 = arith.addf %6, %7 : vector<8x128xf32>
    %c0_6 = arith.constant 0 : index
    %c0_7 = arith.constant 0 : index
    %9 = vector.load %arg5[%c0_6, %c0_7] : memref<8x128xf32, #tpu.memory_space<vmem>>, vector<8x128xf32>
    tpu.vector_store %arg5[%c0_6, %c0_7], %8 {strides = array<i32>} : memref<8x128xf32, #tpu.memory_space<vmem>>, vector<8x128xf32>,
    %c0_i32_8 = arith.constant 0 : i32
    %10 = arith.cmpi eq, %arg1, %c0_i32_8 : i32
    %11 = arith.extui %10 : i1 to i32
    %c0_i32_9 = arith.constant 0 : i32
    %12 = arith.cmpi ne, %11, %c0_i32_9 : i32
    scf.if %12 {
      %c0_10 = arith.constant 0 : index
      %c0_11 = arith.constant 0 : index
      %13 = vector.load %arg5[%c0_10, %c0_11] : memref<8x128xf32, #tpu.memory_space<vmem>>, vector<8x128xf32>
      %14 = vector.shape_cast %13 : vector<8x128xf32> to vector<1x8x128xf32>
      %cst = arith.constant dense<0.000000e+00> : vector<8x128xf32>
      %15 = vector.multi_reduction <add>, %14, %cst [0] : vector<1x8x128xf32> to vector<8x128xf32>
      %c0_12 = arith.constant 0 : index
      %c0_13 = arith.constant 0 : index
      %c0_14 = arith.constant 0 : index
      %16 = vector.load %arg4[%c0_12, %c0_13, %c0_14] : memref<1x8x128xf32, #tpu.memory_space<vmem>>, vector<1x8x128xf32>
      %17 = vector.shape_cast %16 : vector<1x8x128xf32> to vector<8x128xf32>
      %18 = vector.shape_cast %15 : vector<8x128xf32> to vector<1x8x128xf32>
      tpu.vector_store %arg4[%c0_12, %c0_13, %c0_14], %18 {strides = array<i32>} : memref<1x8x128xf32, #tpu.memory_space<vmem>>, vector<1x8x128xf32>,
    } else {
    }
    return
  }
  func.func @transform_0(%arg0: i32, %arg1: i32) -> (i32, i32) {
    %c1_i32 = arith.constant 1 : i32
    %0 = arith.muli %arg0, %c1_i32 : i32
    %1 = arith.addi %0, %arg1 : i32
    %c0_i32 = arith.constant 0 : i32
    %c0_i32_0 = arith.constant 0 : i32
    return %1, %c0_i32 : i32, i32
  }
  func.func @transform_1(%arg0: i32, %arg1: i32) -> (i32, i32) {
    %c1_i32 = arith.constant 1 : i32
    %0 = arith.muli %arg0, %c1_i32 : i32
    %1 = arith.addi %0, %arg1 : i32
    %c0_i32 = arith.constant 0 : i32
    %c0_i32_0 = arith.constant 0 : i32
    return %1, %c0_i32 : i32, i32
  }
  func.func @transform_2(%arg0: i32, %arg1: i32) -> (i32, i32, i32) {
    %c0_i32 = arith.constant 0 : i32
    %c0_i32_0 = arith.constant 0 : i32
    %c0_i32_1 = arith.constant 0 : i32
    return %arg0, %c0_i32, %c0_i32_0 : i32, i32, i32
  }
}

module attributes {stable_mosaic.version = 11 : i64} {
  func.func @_kl_sum_kernel(%arg0: i32, %arg1: i32, %arg2: memref<8x128xf32, #tpu.memory_space<vmem>>, %arg3: memref<8x128xf32, #tpu.memory_space<vmem>>, %arg4: memref<1x8x128xf32, #tpu.memory_space<vmem>>, %arg5: memref<8x128xf32, #tpu.memory_space<vmem>>) attributes {dimension_semantics = [#tpu.dimension_semantics<parallel>, #tpu.dimension_semantics<arbitrary>], iteration_bounds = array<i64: 2, 1>, scalar_prefetch = 0 : i64, scratch_operands = 1 : i64, tpu.core_type = #tpu.core_type<tc>, window_params = [{transform_indices = @transform_0, window_bounds = array<i64: 8, 128>}, {transform_indices = @transform_1, window_bounds = array<i64: 8, 128>}, {transform_indices = @transform_2, window_bounds = array<i64: 1, 8, 128>}]} {
    %c0_i32 = arith.constant 0 : i32
    %0 = arith.cmpi eq, %arg1, %c0_i32 : i32
    %1 = arith.extui %0 : i1 to i32
    %c0_i32_0 = arith.constant 0 : i32
    %2 = arith.cmpi ne, %1, %c0_i32_0 : i32
    scf.if %2 {
      %cst_11 = arith.constant 0.000000e+00 : f32
      %20 = vector.broadcast %cst_11 : f32 to vector<8x128xf32>
      %c0_12 = arith.constant 0 : index
      %c0_13 = arith.constant 0 : index
      %21 = vector.load %arg5[%c0_12, %c0_13] : memref<8x128xf32, #tpu.memory_space<vmem>>, vector<8x128xf32>
      tpu.vector_store %arg5[%c0_12, %c0_13], %20 {strides = array<i32>} : memref<8x128xf32, #tpu.memory_space<vmem>>, vector<8x128xf32>,
    } else {
    }
    %c0 = arith.constant 0 : index
    %c0_1 = arith.constant 0 : index
    %3 = vector.load %arg2[%c0, %c0_1] : memref<8x128xf32, #tpu.memory_space<vmem>>, vector<8x128xf32>
    %c0_2 = arith.constant 0 : index
    %c0_3 = arith.constant 0 : index
    %4 = vector.load %arg3[%c0_2, %c0_3] : memref<8x128xf32, #tpu.memory_space<vmem>>, vector<8x128xf32>
    %c0_4 = arith.constant 0 : index
    %c0_5 = arith.constant 0 : index
    %5 = vector.load %arg5[%c0_4, %c0_5] : memref<8x128xf32, #tpu.memory_space<vmem>>, vector<8x128xf32>
    %6 = arith.mulf %4, %4 : vector<8x128xf32>
    %7 = arith.mulf %3, %3 : vector<8x128xf32>
    %8 = arith.addf %6, %7 : vector<8x128xf32>
    %cst = arith.constant 1.000000e+00 : f32
    %9 = vector.broadcast %cst : f32 to vector<8x128xf32>
    %10 = arith.subf %8, %9 : vector<8x128xf32>
    %cst_6 = arith.constant 5.000000e-01 : f32
    %11 = vector.broadcast %cst_6 : f32 to vector<8x128xf32>
    %12 = arith.mulf %11, %10 : vector<8x128xf32>
    %13 = math.log %4 : vector<8x128xf32>
    %14 = arith.subf %12, %13 : vector<8x128xf32>
    %15 = arith.addf %5, %14 : vector<8x128xf32>
    %c0_7 = arith.constant 0 : index
    %c0_8 = arith.constant 0 : index
    %16 = vector.load %arg5[%c0_7, %c0_8] : memref<8x128xf32, #tpu.memory_space<vmem>>, vector<8x128xf32>
    tpu.vector_store %arg5[%c0_7, %c0_8], %15 {strides = array<i32>} : memref<8x128xf32, #tpu.memory_space<vmem>>, vector<8x128xf32>,
    %c0_i32_9 = arith.constant 0 : i32
    %17 = arith.cmpi eq, %arg1, %c0_i32_9 : i32
    %18 = arith.extui %17 : i1 to i32
    %c0_i32_10 = arith.constant 0 : i32
    %19 = arith.cmpi ne, %18, %c0_i32_10 : i32
    scf.if %19 {
      %c0_11 = arith.constant 0 : index
      %c0_12 = arith.constant 0 : index
      %20 = vector.load %arg5[%c0_11, %c0_12] : memref<8x128xf32, #tpu.memory_space<vmem>>, vector<8x128xf32>
      %21 = vector.shape_cast %20 : vector<8x128xf32> to vector<1x8x128xf32>
      %cst_13 = arith.constant dense<0.000000e+00> : vector<8x128xf32>
      %22 = vector.multi_reduction <add>, %21, %cst_13 [0] : vector<1x8x128xf32> to vector<8x128xf32>
      %c0_14 = arith.constant 0 : index
      %c0_15 = arith.constant 0 : index
      %c0_16 = arith.constant 0 : index
      %23 = vector.load %arg4[%c0_14, %c0_15, %c0_16] : memref<1x8x128xf32, #tpu.memory_space<vmem>>, vector<1x8x128xf32>
      %24 = vector.shape_cast %23 : vector<1x8x128xf32> to vector<8x128xf32>
      %25 = vector.shape_cast %22 : vector<8x128xf32> to vector<1x8x128xf32>
      tpu.vector_store %arg4[%c0_14, %c0_15, %c0_16], %25 {strides = array<i32>} : memref<1x8x128xf32, #tpu.memory_space<vmem>>, vector<1x8x128xf32>,
    } else {
    }
    return
  }
  func.func @transform_0(%arg0: i32, %arg1: i32) -> (i32, i32) {
    %c1_i32 = arith.constant 1 : i32
    %0 = arith.muli %arg0, %c1_i32 : i32
    %1 = arith.addi %0, %arg1 : i32
    %c0_i32 = arith.constant 0 : i32
    %c0_i32_0 = arith.constant 0 : i32
    return %1, %c0_i32 : i32, i32
  }
  func.func @transform_1(%arg0: i32, %arg1: i32) -> (i32, i32) {
    %c1_i32 = arith.constant 1 : i32
    %0 = arith.muli %arg0, %c1_i32 : i32
    %1 = arith.addi %0, %arg1 : i32
    %c0_i32 = arith.constant 0 : i32
    %c0_i32_0 = arith.constant 0 : i32
    return %1, %c0_i32 : i32, i32
  }
  func.func @transform_2(%arg0: i32, %arg1: i32) -> (i32, i32, i32) {
    %c0_i32 = arith.constant 0 : i32
    %c0_i32_0 = arith.constant 0 : i32
    %c0_i32_1 = arith.constant 0 : i32
    return %arg0, %c0_i32, %c0_i32_0 : i32, i32, i32
  }
}

</mosaic_0001>

<llo_original>
// kernel: _vae_loss_impl.2
$region0: #{_vae_loss_impl.2}
  #allocation0 [shape = 'u32[]', space=smem, size = 0x4, offset = 0x4, fixed_abs, tag = 'smem constant byte address 0x4 - core index']
  #allocation1 [shape = 'u32[144,128]{1,0:T(1,128)}', space=vmem, size = 0x12000, scoped, tag = 'internal scratch']
  #allocation2 [shape = 'f32[8,128]{1,0:T(8,128)}', space=vmem, size = 0x1000, scoped, tag = 'scratch operand']
  %s0 = inlined_call_operand.vmem [shape: f32[16,128], index: 0, kind: input, shape index: {}]
  %s1 = inlined_call_operand.vmem [shape: f32[16,128], index: 1, kind: input, shape index: {}]
  %s2 = inlined_call_operand.vmem [shape: f32[2,8,128], index: 2, kind: output, shape index: {}]
  %s3 = sld [smem:[#allocation0]]
  $region49: #{_vae_loss_impl.2} parent=0
    _
  %s5 = ssub.s32 1, %s3
  %s6 = scalar_select 0, %s5, %s3
  loop: start=0, step=1, limit=4
  $region2: #{_vae_loss_impl.2} parent=0 // loop_pre_header
    _
  $region3: #{_vae_loss_impl.2} parent=0 // loop_header
    %s8 = sphi 0, %s12
    %p9 = scmp.ge.s32.totalorder %s8, 4
    %s15 = sphi 0, %s27
    %s16 = sphi 0, %s23
    %s17 = sphi 0, %s15
    %s18 = sphi 0, %s16
    %s19 = sphi 0, %s17
    %s20 = sphi 0, %s18
    %s32 = sphi 0, %s34
    %s35 = sphi 0, %s32
    %s36 = sphi 0, %s35
    %s52 = sphi 0, %s36
    %s60 = sphi 0, %s62
    %s63 = sphi 0, %s60
    %s64 = sphi 0, %s63
    %s80 = sphi 0, %s64
    %s86 = sphi 0, %s88
    %s89 = sphi 0, %s86
    %s90 = sphi 0, %s89
    %s106 = sphi 0, %s90
  $region4: #{_vae_loss_impl.2} parent=0 // loop_header_branch
    %11 = sbr.rel (%p9) target = $region8
  $region5: #{_vae_loss_impl.2} parent=0 // loop_body
    %s13 = ssub.s32 %s8, 1
    %s14 = ssub.s32 %s8, 2
    %s21 = sadd.s32 1, %s16
    %p22 = scmp.ge.s32.totalorder %s21, 1
    %s23 = scalar_select %p22, 0, %s21
    %s24 = sadd.s32 1, %s15
    %s25 = scalar_select %p22, %s24, %s15
    %p26 = scmp.ge.s32.totalorder %s25, 2
    %s27 = scalar_select %p26, 0, %s25
    %s28 = sadd.s32 %s15, %s16
    %s29 = sadd.s32 %s27, %s23
    %s30 = ssub.s32 %s28, %s29
    %p31 = scmp.eq.s32.totalorder %s30, 0
    %s33 = sadd.s32 %s32, 1
    %s34 = scalar_select %p31, %s32, %s33
    %p37 = pneg %p31
    %p38 = scmp.eq.s32.totalorder %s8, 1
    %p39 = por %p37, %p38
    %p40 = scmp.ne.s32.totalorder %s32, %s35
    %p41 = scmp.eq.s32.totalorder %s8, 0
    %p42 = por %p40, %p41
    %p43 = scmp.ne.s32.totalorder %s32, %s35
    %p44 = scmp.eq.s32.totalorder %s13, 1
    %p45 = por %p43, %p44
    %p46 = scmp.ne.s32.totalorder %s35, %s36
    %p47 = scmp.eq.s32.totalorder %s13, 0
    %p48 = por %p46, %p47
    %p49 = scmp.ne.s32.totalorder %s35, %s36
    %p50 = scmp.eq.s32.totalorder %s14, 1
    %p51 = por %p49, %p50
    %p53 = scmp.ne.s32.totalorder %s36, %s52
    %p54 = scmp.eq.s32.totalorder %s14, 0
    %p55 = por %p53, %p54
    %s56 = sadd.s32 %s15, %s16
    %s57 = sadd.s32 %s27, %s23
    %s58 = ssub.s32 %s56, %s57
    %p59 = scmp.eq.s32.totalorder %s58, 0
    %s61 = sadd.s32 %s60, 1
    %s62 = scalar_select %p59, %s60, %s61
    %p65 = pneg %p59
    %p66 = scmp.eq.s32.totalorder %s8, 1
    %p67 = por %p65, %p66
    %p68 = scmp.ne.s32.totalorder %s60, %s63
    %p69 = scmp.eq.s32.totalorder %s8, 0
    %p70 = por %p68, %p69
    %p71 = scmp.ne.s32.totalorder %s60, %s63
    %p72 = scmp.eq.s32.totalorder %s13, 1
    %p73 = por %p71, %p72
    %p74 = scmp.ne.s32.totalorder %s63, %s64
    %p75 = scmp.eq.s32.totalorder %s13, 0
    %p76 = por %p74, %p75
    %p77 = scmp.ne.s32.totalorder %s63, %s64
    %p78 = scmp.eq.s32.totalorder %s14, 1
    %p79 = por %p77, %p78
    %p81 = scmp.ne.s32.totalorder %s64, %s80
    %p82 = scmp.eq.s32.totalorder %s14, 0
    %p83 = por %p81, %p82
    %s84 = ssub.s32 %s15, %s27
    %p85 = scmp.eq.s32.totalorder %s84, 0
    %s87 = sadd.s32 %s86, 1
    %s88 = scalar_select %p85, %s86, %s87
    %p91 = pneg %p85
    %p92 = scmp.eq.s32.totalorder %s8, 1
    %p93 = por %p91, %p92
    %p94 = scmp.ne.s32.totalorder %s86, %s89
    %p95 = scmp.eq.s32.totalorder %s8, 0
    %p96 = por %p94, %p95
    %p97 = scmp.ne.s32.totalorder %s86, %s89
    %p98 = scmp.eq.s32.totalorder %s13, 1
    %p99 = por %p97, %p98
    %p100 = scmp.ne.s32.totalorder %s89, %s90
    %p101 = scmp.eq.s32.totalorder %s13, 0
    %p102 = por %p100, %p101
    %p103 = scmp.ne.s32.totalorder %s89, %s90
    %p104 = scmp.eq.s32.totalorder %s14, 1
    %p105 = por %p103, %p104
    %p107 = scmp.ne.s32.totalorder %s90, %s106
    %p108 = scmp.eq.s32.totalorder %s14, 0
    %p109 = por %p107, %p108
    %p110 = scmp.le.s32.totalorder 1, %s8
    %p111 = scmp.lt.s32.totalorder %s8, 3
    %p112 = pnand %p110, %p111
    %p113 = pneg %p112
    // Predicated region
    $region9: #{_vae_loss_impl.2} parent=5 // pred_check
      _
    $region10: #{_vae_loss_impl.2} parent=5 // pred_check_branch
      %115 = sbr.rel (%p112) target = $region12
    $region11: #{_vae_loss_impl.2} parent=5 // pred_region
      %s116 = ssub.s32 %s8, 1
    $region12: #{_vae_loss_impl.2} parent=5 // pred_fallthru
      _
    %p117 = scmp.lt.s32.totalorder %s8, 2
    // Predicated region
    $region13: #{_vae_loss_impl.2} parent=5 // pred_check
      %p118 = pneg %p117
    $region14: #{_vae_loss_impl.2} parent=5 // pred_check_branch
      %120 = sbr.rel (%p118) target = $region16
    $region15: #{_vae_loss_impl.2} parent=5 // pred_region
      // Predicated region
      $region17: #{_vae_loss_impl.2} parent=15 // pred_check
        %p121 = pneg %p42
      $region18: #{_vae_loss_impl.2} parent=15 // pred_check_branch
        %123 = sbr.rel (%p121) target = $region20
      $region19: #{_vae_loss_impl.2} parent=15 // pred_region
        %s124 = sadd.s32 %s15, %s16
        %p125 = scmp.lt.s32.totalorder %s124, 1
        %s126 = scalar_select %p125, %s124, 1
        %s127 = smul.addr %s126, 8
        %s128 = scalar_lea.vmem %s0, %s127
        %s129 = sadd.s32 %s15, %s16
      $region20: #{_vae_loss_impl.2} parent=15 // pred_fallthru
        _
      // Predicated region
      $region21: #{_vae_loss_impl.2} parent=15 // pred_check
        %p130 = pneg %p70
      $region22: #{_vae_loss_impl.2} parent=15 // pred_check_branch
        %132 = sbr.rel (%p130) target = $region24
      $region23: #{_vae_loss_impl.2} parent=15 // pred_region
        %s133 = sadd.s32 %s15, %s16
        %p134 = scmp.lt.s32.totalorder %s133, 1
        %s135 = scalar_select %p134, %s133, 1
        %s136 = smul.addr %s135, 8
        %s137 = scalar_lea.vmem %s1, %s136
        %s138 = sadd.s32 %s15, %s16
      $region24: #{_vae_loss_impl.2} parent=15 // pred_fallthru
        _
    $region16: #{_vae_loss_impl.2} parent=5 // pred_fallthru
      _
    %p139 = scmp.le.s32.totalorder 1, %s8
    %p140 = scmp.lt.s32.totalorder %s8, 3
    %p141 = pnand %p139, %p140
    %p142 = pneg %p141
    // Predicated region
    $region25: #{_vae_loss_impl.2} parent=5 // pred_check
      _
    $region26: #{_vae_loss_impl.2} parent=5 // pred_check_branch
      %144 = sbr.rel (%p141) target = $region28
    $region27: #{_vae_loss_impl.2} parent=5 // pred_region
      %s145 = ssub.s32 %s8, 1
      %s146 = sadd.s32 %s17, %s18
      %p147 = scmp.lt.s32.totalorder %s146, 1
      %s148 = scalar_select %p147, %s146, 1
      %s149 = smul.addr %s148, 8
      %s150 = scalar_lea.vmem %s0, %s149
      %p151 = pneg %p48
      %p152 = pneg %p45
      %s153 = sadd.s32 %s17, %s18
      %p154 = scmp.lt.s32.totalorder %s153, 1
      %s155 = scalar_select %p154, %s153, 1
      %s156 = smul.addr %s155, 8
      %s157 = scalar_lea.vmem %s1, %s156
      %p158 = pneg %p76
      %p159 = pneg %p73
      %p160 = pneg %p102
      %p161 = pneg %p99
      %p162 = scmp.lt.s32.totalorder %s17, 1
      %s163 = scalar_select %p162, %s17, 1
      %s164 = smul.addr %s163, 8
      %s165 = scalar_lea.vmem %s2, %s164
      %s166 = sadd.s32 %s17, %s18
      %p167 = scmp.lt.s32.totalorder %s166, 1
      %s168 = scalar_select %p167, %s166, 1
      %s169 = smul.addr %s168, 8
      %s170 = scalar_lea.vmem %s0, %s169
      %s171 = sadd.s32 %s17, %s18
      %s172 = sadd.s32 %s17, %s18
      %p173 = scmp.lt.s32.totalorder %s172, 1
      %s174 = scalar_select %p173, %s172, 1
      %s175 = smul.addr %s174, 8
      %s176 = scalar_lea.vmem %s1, %s175
      %s177 = sadd.s32 %s17, %s18
      %p178 = scmp.lt.s32.totalorder %s17, 1
      %s179 = scalar_select %p178, %s17, 1
      %s180 = smul.addr %s179, 8
      %s181 = scalar_lea.vmem %s2, %s180
      %p182 = scmp.eq.s32.totalorder %s18, 0
      // Predicated region
      $region29: #{_vae_loss_impl.2} parent=27 // pred_check
        %p183 = pneg %p182
      $region30: #{_vae_loss_impl.2} parent=27 // pred_check_branch
        %185 = sbr.rel (%p183) target = $region32
      $region31: #{_vae_loss_impl.2} parent=27 // pred_region
        %186 = vst [vmem:[#allocation2] sm:$0xff] 0.0
      $region32: #{_vae_loss_impl.2} parent=27 // pred_fallthru
        _
      %v187 = vld [vmem:[%s176] sm:$0xff]
      %v188 = vld [vmem:[%s170] sm:$0xff]
      %v189 = vsub.f32 %v187, %v188
      %v190 = vld [vmem:[#allocation2] sm:$0xff]
      %v191 = vmul.f32 %v189, %v189
      %v192 = vadd.f32 %v190, %v191
      %193 = vst [vmem:[#allocation2] sm:$0xff] %v192
      // Predicated region
      $region33: #{_vae_loss_impl.2} parent=27 // pred_check
        %p194 = pneg %p182
      $region34: #{_vae_loss_impl.2} parent=27 // pred_check_branch
        %196 = sbr.rel (%p194) target = $region36
      $region35: #{_vae_loss_impl.2} parent=27 // pred_region
        %v197 = vld [vmem:[#allocation2] sm:$0xff]
        %v198 = vadd.f32 %v197, 0.0
        %199 = vst [vmem:[%s181] sm:$0xff] %v198
      $region36: #{_vae_loss_impl.2} parent=27 // pred_fallthru
        _
      %p200 = scmp.lt.s32.totalorder %s17, 1
      %s201 = scalar_select %p200, %s17, 1
      %s202 = smul.addr %s201, 8
      %s203 = scalar_lea.vmem %s2, %s202
      // Predicated region
      $region37: #{_vae_loss_impl.2} parent=27 // pred_check
        %p204 = pneg %p99
      $region38: #{_vae_loss_impl.2} parent=27 // pred_check_branch
        %206 = sbr.rel (%p204) target = $region40
      $region39: #{_vae_loss_impl.2} parent=27 // pred_region
        _
      $region40: #{_vae_loss_impl.2} parent=27 // pred_fallthru
        _
    $region28: #{_vae_loss_impl.2} parent=5 // pred_fallthru
      _
    %p207 = scmp.le.s32.totalorder 2, %s8
    // Predicated region
    $region41: #{_vae_loss_impl.2} parent=5 // pred_check
      %p208 = pneg %p207
    $region42: #{_vae_loss_impl.2} parent=5 // pred_check_branch
      %210 = sbr.rel (%p208) target = $region44
    $region43: #{_vae_loss_impl.2} parent=5 // pred_region
      %s211 = ssub.s32 %s8, 2
      // Predicated region
      $region45: #{_vae_loss_impl.2} parent=43 // pred_check
        %p212 = pneg %p105
      $region46: #{_vae_loss_impl.2} parent=43 // pred_check_branch
        %214 = sbr.rel (%p212) target = $region48
      $region47: #{_vae_loss_impl.2} parent=43 // pred_region
        %p215 = scmp.lt.s32.totalorder %s19, 1
        %s216 = scalar_select %p215, %s19, 1
        %s217 = smul.addr %s216, 8
        %s218 = scalar_lea.vmem %s2, %s217
      $region48: #{_vae_loss_impl.2} parent=43 // pred_fallthru
        _
    $region44: #{_vae_loss_impl.2} parent=5 // pred_fallthru
      _
  $region6: #{_vae_loss_impl.2} parent=0 // loop_footer
    %s12 = sadd.s32 1, %s8
  $region7: #{_vae_loss_impl.2} parent=0 // loop_footer_branch
    %7 = sbr.rel target = $region3
  $region8: #{_vae_loss_impl.2} parent=0 // loop_exit
    _

// kernel: _vae_loss_impl.3
$region0: #{_vae_loss_impl.3}
  #allocation0 [shape = 'u32[]', space=smem, size = 0x4, offset = 0x4, fixed_abs, tag = 'smem constant byte address 0x4 - core index']
  #allocation1 [shape = 'u32[144,128]{1,0:T(1,128)}', space=vmem, size = 0x12000, scoped, tag = 'internal scratch']
  #allocation2 [shape = 'f32[8,128]{1,0:T(8,128)}', space=vmem, size = 0x1000, scoped, tag = 'scratch operand']
  %s0 = inlined_call_operand.vmem [shape: f32[16,128], index: 0, kind: input, shape index: {}]
  %s1 = inlined_call_operand.vmem [shape: f32[16,128], index: 1, kind: input, shape index: {}]
  %s2 = inlined_call_operand.vmem [shape: f32[2,8,128], index: 2, kind: output, shape index: {}]
  %s3 = sld [smem:[#allocation0]]
  $region49: #{_vae_loss_impl.3} parent=0
    _
  %s5 = ssub.s32 1, %s3
  %s6 = scalar_select 0, %s5, %s3
  loop: start=0, step=1, limit=4
  $region2: #{_vae_loss_impl.3} parent=0 // loop_pre_header
    _
  $region3: #{_vae_loss_impl.3} parent=0 // loop_header
    %s8 = sphi 0, %s12
    %p9 = scmp.ge.s32.totalorder %s8, 4
    %s15 = sphi 0, %s27
    %s16 = sphi 0, %s23
    %s17 = sphi 0, %s15
    %s18 = sphi 0, %s16
    %s19 = sphi 0, %s17
    %s20 = sphi 0, %s18
    %s32 = sphi 0, %s34
    %s35 = sphi 0, %s32
    %s36 = sphi 0, %s35
    %s52 = sphi 0, %s36
    %s60 = sphi 0, %s62
    %s63 = sphi 0, %s60
    %s64 = sphi 0, %s63
    %s80 = sphi 0, %s64
    %s86 = sphi 0, %s88
    %s89 = sphi 0, %s86
    %s90 = sphi 0, %s89
    %s106 = sphi 0, %s90
  $region4: #{_vae_loss_impl.3} parent=0 // loop_header_branch
    %11 = sbr.rel (%p9) target = $region8
  $region5: #{_vae_loss_impl.3} parent=0 // loop_body
    %s13 = ssub.s32 %s8, 1
    %s14 = ssub.s32 %s8, 2
    %s21 = sadd.s32 1, %s16
    %p22 = scmp.ge.s32.totalorder %s21, 1
    %s23 = scalar_select %p22, 0, %s21
    %s24 = sadd.s32 1, %s15
    %s25 = scalar_select %p22, %s24, %s15
    %p26 = scmp.ge.s32.totalorder %s25, 2
    %s27 = scalar_select %p26, 0, %s25
    %s28 = sadd.s32 %s15, %s16
    %s29 = sadd.s32 %s27, %s23
    %s30 = ssub.s32 %s28, %s29
    %p31 = scmp.eq.s32.totalorder %s30, 0
    %s33 = sadd.s32 %s32, 1
    %s34 = scalar_select %p31, %s32, %s33
    %p37 = pneg %p31
    %p38 = scmp.eq.s32.totalorder %s8, 1
    %p39 = por %p37, %p38
    %p40 = scmp.ne.s32.totalorder %s32, %s35
    %p41 = scmp.eq.s32.totalorder %s8, 0
    %p42 = por %p40, %p41
    %p43 = scmp.ne.s32.totalorder %s32, %s35
    %p44 = scmp.eq.s32.totalorder %s13, 1
    %p45 = por %p43, %p44
    %p46 = scmp.ne.s32.totalorder %s35, %s36
    %p47 = scmp.eq.s32.totalorder %s13, 0
    %p48 = por %p46, %p47
    %p49 = scmp.ne.s32.totalorder %s35, %s36
    %p50 = scmp.eq.s32.totalorder %s14, 1
    %p51 = por %p49, %p50
    %p53 = scmp.ne.s32.totalorder %s36, %s52
    %p54 = scmp.eq.s32.totalorder %s14, 0
    %p55 = por %p53, %p54
    %s56 = sadd.s32 %s15, %s16
    %s57 = sadd.s32 %s27, %s23
    %s58 = ssub.s32 %s56, %s57
    %p59 = scmp.eq.s32.totalorder %s58, 0
    %s61 = sadd.s32 %s60, 1
    %s62 = scalar_select %p59, %s60, %s61
    %p65 = pneg %p59
    %p66 = scmp.eq.s32.totalorder %s8, 1
    %p67 = por %p65, %p66
    %p68 = scmp.ne.s32.totalorder %s60, %s63
    %p69 = scmp.eq.s32.totalorder %s8, 0
    %p70 = por %p68, %p69
    %p71 = scmp.ne.s32.totalorder %s60, %s63
    %p72 = scmp.eq.s32.totalorder %s13, 1
    %p73 = por %p71, %p72
    %p74 = scmp.ne.s32.totalorder %s63, %s64
    %p75 = scmp.eq.s32.totalorder %s13, 0
    %p76 = por %p74, %p75
    %p77 = scmp.ne.s32.totalorder %s63, %s64
    %p78 = scmp.eq.s32.totalorder %s14, 1
    %p79 = por %p77, %p78
    %p81 = scmp.ne.s32.totalorder %s64, %s80
    %p82 = scmp.eq.s32.totalorder %s14, 0
    %p83 = por %p81, %p82
    %s84 = ssub.s32 %s15, %s27
    %p85 = scmp.eq.s32.totalorder %s84, 0
    %s87 = sadd.s32 %s86, 1
    %s88 = scalar_select %p85, %s86, %s87
    %p91 = pneg %p85
    %p92 = scmp.eq.s32.totalorder %s8, 1
    %p93 = por %p91, %p92
    %p94 = scmp.ne.s32.totalorder %s86, %s89
    %p95 = scmp.eq.s32.totalorder %s8, 0
    %p96 = por %p94, %p95
    %p97 = scmp.ne.s32.totalorder %s86, %s89
    %p98 = scmp.eq.s32.totalorder %s13, 1
    %p99 = por %p97, %p98
    %p100 = scmp.ne.s32.totalorder %s89, %s90
    %p101 = scmp.eq.s32.totalorder %s13, 0
    %p102 = por %p100, %p101
    %p103 = scmp.ne.s32.totalorder %s89, %s90
    %p104 = scmp.eq.s32.totalorder %s14, 1
    %p105 = por %p103, %p104
    %p107 = scmp.ne.s32.totalorder %s90, %s106
    %p108 = scmp.eq.s32.totalorder %s14, 0
    %p109 = por %p107, %p108
    %p110 = scmp.le.s32.totalorder 1, %s8
    %p111 = scmp.lt.s32.totalorder %s8, 3
    %p112 = pnand %p110, %p111
    %p113 = pneg %p112
    // Predicated region
    $region9: #{_vae_loss_impl.3} parent=5 // pred_check
      _
    $region10: #{_vae_loss_impl.3} parent=5 // pred_check_branch
      %115 = sbr.rel (%p112) target = $region12
    $region11: #{_vae_loss_impl.3} parent=5 // pred_region
      %s116 = ssub.s32 %s8, 1
    $region12: #{_vae_loss_impl.3} parent=5 // pred_fallthru
      _
    %p117 = scmp.lt.s32.totalorder %s8, 2
    // Predicated region
    $region13: #{_vae_loss_impl.3} parent=5 // pred_check
      %p118 = pneg %p117
    $region14: #{_vae_loss_impl.3} parent=5 // pred_check_branch
      %120 = sbr.rel (%p118) target = $region16
    $region15: #{_vae_loss_impl.3} parent=5 // pred_region
      // Predicated region
      $region17: #{_vae_loss_impl.3} parent=15 // pred_check
        %p121 = pneg %p42
      $region18: #{_vae_loss_impl.3} parent=15 // pred_check_branch
        %123 = sbr.rel (%p121) target = $region20
      $region19: #{_vae_loss_impl.3} parent=15 // pred_region
        %s124 = sadd.s32 %s15, %s16
        %p125 = scmp.lt.s32.totalorder %s124, 1
        %s126 = scalar_select %p125, %s124, 1
        %s127 = smul.addr %s126, 8
        %s128 = scalar_lea.vmem %s0, %s127
        %s129 = sadd.s32 %s15, %s16
      $region20: #{_vae_loss_impl.3} parent=15 // pred_fallthru
        _
      // Predicated region
      $region21: #{_vae_loss_impl.3} parent=15 // pred_check
        %p130 = pneg %p70
      $region22: #{_vae_loss_impl.3} parent=15 // pred_check_branch
        %132 = sbr.rel (%p130) target = $region24
      $region23: #{_vae_loss_impl.3} parent=15 // pred_region
        %s133 = sadd.s32 %s15, %s16
        %p134 = scmp.lt.s32.totalorder %s133, 1
        %s135 = scalar_select %p134, %s133, 1
        %s136 = smul.addr %s135, 8
        %s137 = scalar_lea.vmem %s1, %s136
        %s138 = sadd.s32 %s15, %s16
      $region24: #{_vae_loss_impl.3} parent=15 // pred_fallthru
        _
    $region16: #{_vae_loss_impl.3} parent=5 // pred_fallthru
      _
    %p139 = scmp.le.s32.totalorder 1, %s8
    %p140 = scmp.lt.s32.totalorder %s8, 3
    %p141 = pnand %p139, %p140
    %p142 = pneg %p141
    // Predicated region
    $region25: #{_vae_loss_impl.3} parent=5 // pred_check
      _
    $region26: #{_vae_loss_impl.3} parent=5 // pred_check_branch
      %144 = sbr.rel (%p141) target = $region28
    $region27: #{_vae_loss_impl.3} parent=5 // pred_region
      %s145 = ssub.s32 %s8, 1
      %s146 = sadd.s32 %s17, %s18
      %p147 = scmp.lt.s32.totalorder %s146, 1
      %s148 = scalar_select %p147, %s146, 1
      %s149 = smul.addr %s148, 8
      %s150 = scalar_lea.vmem %s0, %s149
      %p151 = pneg %p48
      %p152 = pneg %p45
      %s153 = sadd.s32 %s17, %s18
      %p154 = scmp.lt.s32.totalorder %s153, 1
      %s155 = scalar_select %p154, %s153, 1
      %s156 = smul.addr %s155, 8
      %s157 = scalar_lea.vmem %s1, %s156
      %p158 = pneg %p76
      %p159 = pneg %p73
      %p160 = pneg %p102
      %p161 = pneg %p99
      %p162 = scmp.lt.s32.totalorder %s17, 1
      %s163 = scalar_select %p162, %s17, 1
      %s164 = smul.addr %s163, 8
      %s165 = scalar_lea.vmem %s2, %s164
      %s166 = sadd.s32 %s17, %s18
      %p167 = scmp.lt.s32.totalorder %s166, 1
      %s168 = scalar_select %p167, %s166, 1
      %s169 = smul.addr %s168, 8
      %s170 = scalar_lea.vmem %s0, %s169
      %s171 = sadd.s32 %s17, %s18
      %s172 = sadd.s32 %s17, %s18
      %p173 = scmp.lt.s32.totalorder %s172, 1
      %s174 = scalar_select %p173, %s172, 1
      %s175 = smul.addr %s174, 8
      %s176 = scalar_lea.vmem %s1, %s175
      %s177 = sadd.s32 %s17, %s18
      %p178 = scmp.lt.s32.totalorder %s17, 1
      %s179 = scalar_select %p178, %s17, 1
      %s180 = smul.addr %s179, 8
      %s181 = scalar_lea.vmem %s2, %s180
      %p182 = scmp.eq.s32.totalorder %s18, 0
      // Predicated region
      $region29: #{_vae_loss_impl.3} parent=27 // pred_check
        %p183 = pneg %p182
      $region30: #{_vae_loss_impl.3} parent=27 // pred_check_branch
        %185 = sbr.rel (%p183) target = $region32
      $region31: #{_vae_loss_impl.3} parent=27 // pred_region
        %186 = vst [vmem:[#allocation2] sm:$0xff] 0.0
      $region32: #{_vae_loss_impl.3} parent=27 // pred_fallthru
        _
      %v187 = vld [vmem:[%s170] sm:$0xff]
      %v188 = vld [vmem:[%s176] sm:$0xff]
      %v189 = vld [vmem:[#allocation2] sm:$0xff]
      %v190 = vmul.f32 %v188, %v188
      %v191 = vmul.f32 %v187, %v187
      %v192 = vadd.f32 %v190, %v191
      %v193 = vsub.f32 %v192, 1.0
      %v194 = vmul.f32 %v193, 0.5
      %v195 = vlog2.pop %v188
      %v196 = vmul.f32 %v195, 0.6931472
      %v197 = vsub.f32 %v194, %v196
      %v198 = vadd.f32 %v189, %v197
      %199 = vst [vmem:[#allocation2] sm:$0xff] %v198
      // Predicated region
      $region33: #{_vae_loss_impl.3} parent=27 // pred_check
        %p200 = pneg %p182
      $region34: #{_vae_loss_impl.3} parent=27 // pred_check_branch
        %202 = sbr.rel (%p200) target = $region36
      $region35: #{_vae_loss_impl.3} parent=27 // pred_region
        %v203 = vld [vmem:[#allocation2] sm:$0xff]
        %v204 = vadd.f32 %v203, 0.0
        %205 = vst [vmem:[%s181] sm:$0xff] %v204
      $region36: #{_vae_loss_impl.3} parent=27 // pred_fallthru
        _
      %p206 = scmp.lt.s32.totalorder %s17, 1
      %s207 = scalar_select %p206, %s17, 1
      %s208 = smul.addr %s207, 8
      %s209 = scalar_lea.vmem %s2, %s208
      // Predicated region
      $region37: #{_vae_loss_impl.3} parent=27 // pred_check
        %p210 = pneg %p99
      $region38: #{_vae_loss_impl.3} parent=27 // pred_check_branch
        %212 = sbr.rel (%p210) target = $region40
      $region39: #{_vae_loss_impl.3} parent=27 // pred_region
        _
      $region40: #{_vae_loss_impl.3} parent=27 // pred_fallthru
        _
    $region28: #{_vae_loss_impl.3} parent=5 // pred_fallthru
      _
    %p213 = scmp.le.s32.totalorder 2, %s8
    // Predicated region
    $region41: #{_vae_loss_impl.3} parent=5 // pred_check
      %p214 = pneg %p213
    $region42: #{_vae_loss_impl.3} parent=5 // pred_check_branch
      %216 = sbr.rel (%p214) target = $region44
    $region43: #{_vae_loss_impl.3} parent=5 // pred_region
      %s217 = ssub.s32 %s8, 2
      // Predicated region
      $region45: #{_vae_loss_impl.3} parent=43 // pred_check
        %p218 = pneg %p105
      $region46: #{_vae_loss_impl.3} parent=43 // pred_check_branch
        %220 = sbr.rel (%p218) target = $region48
      $region47: #{_vae_loss_impl.3} parent=43 // pred_region
        %p221 = scmp.lt.s32.totalorder %s19, 1
        %s222 = scalar_select %p221, %s19, 1
        %s223 = smul.addr %s222, 8
        %s224 = scalar_lea.vmem %s2, %s223
      $region48: #{_vae_loss_impl.3} parent=43 // pred_fallthru
        _
    $region44: #{_vae_loss_impl.3} parent=5 // pred_fallthru
      _
  $region6: #{_vae_loss_impl.3} parent=0 // loop_footer
    %s12 = sadd.s32 1, %s8
  $region7: #{_vae_loss_impl.3} parent=0 // loop_footer_branch
    %7 = sbr.rel target = $region3
  $region8: #{_vae_loss_impl.3} parent=0 // loop_exit
    _

</llo_original>
